<compile_context>
chip_gen: v5e
topology: v5e:2x2
jax: 0.10.0
libtpu: 0.0.40
codegen_flags: <defaults>
</compile_context>

<pallas_src>
import functools

import numpy as np

import jax
import jax.numpy as jnp
from jax.experimental import pallas as pl
from jax.experimental.pallas import tpu as pltpu


def _round_up(x, m):
    return ((x + m - 1) // m) * m


def get_n_pairs(labels, rng):
    """Host-side replica of NPairLoss_labels.get_n_pairs."""
    # TODO(synk): pair/negative index selection (data-dependent shapes + np.random.choice)
    # has no clean Pallas equivalent; it stays on the host, matching the PyTorch module.
    labels = np.asarray(labels)
    n_pairs = []
    for label in np.unique(labels):
        label_indices = np.where(labels == label)[0]
        if len(label_indices) < 2:
            continue
        anchor, positive = rng.choice(label_indices, 2, replace=False)
        n_pairs.append([anchor, positive])
    n_pairs = np.asarray(n_pairs, dtype=np.int32)
    n_negatives = []
    for i in range(len(n_pairs)):
        negative = np.concatenate([n_pairs[:i, 1], n_pairs[i + 1:, 1]])
        n_negatives.append(negative)
    n_negatives = np.asarray(n_negatives, dtype=np.int32)
    return n_pairs, n_negatives


def _npair_loss_kernel(n_rows, l2_reg, a_ref, prow_ref, pall_ref, out_ref):
    # a_ref, prow_ref: (tile_n, e_pad) pipelined row tiles (input dtype)
    # pall_ref:        (n_cols_pad, e_pad) all positives, resident (input dtype)
    # out_ref:         (tile_n, 128) f32 lane-dense per-row partial losses (lane 0)
    i = pl.program_id(0)
    tile_n = a_ref.shape[0]
    n_cols = pall_ref.shape[0]

    # MXU: native-dtype operands (bf16 stays bf16 -> full MXU rate), f32 accumulation.
    s = jax.lax.dot_general(a_ref[...], pall_ref[...], (((1,), (1,)), ((), ())),
                            preferred_element_type=jnp.float32)        # (tile_n, n_cols)

    # Small per-row tiles on the VPU; cast once to f32 (no-op for f32 inputs).
    a32 = a_ref[...].astype(jnp.float32)
    p32 = prow_ref[...].astype(jnp.float32)
    s_ii = jnp.sum(a32 * p32, axis=-1, keepdims=True)                  # (tile_n, 1)  a_i . p_i
    sq = jnp.sum(a32 * a32 + p32 * p32, axis=-1, keepdims=True)        # (tile_n, 1)  |a|^2+|p|^2

    # Mask only padded columns (single cmp + select). The self column contributes
    # exp(S[i,i] - s_ii) ~= exp(0) = 1, which is exactly the "+1" inside the log
    # (tiny MXU-vs-VPU rounding delta on the diagonal, well under tolerance).
    col = jax.lax.broadcasted_iota(jnp.int32, (tile_n, n_cols), 1)
    x = jnp.where(col < n_rows, s - s_ii, -jnp.inf)                    # exp(-inf) -> exact 0
    row_sum = jnp.sum(jnp.exp(x), axis=-1, keepdims=True)              # (tile_n, 1), >= ~1

    # Per-row loss contribution (log term + folded l2 term); zero padded tail rows.
    row_id = jax.lax.broadcasted_iota(jnp.int32, (tile_n, 1), 0) + i * tile_n
    contrib = jnp.log(row_sum) + jnp.float32(l2_reg) * sq
    contrib = jnp.where(row_id < n_rows, contrib, 0.0)

    # Lane-dense output block: per-row value in lane 0, zeros elsewhere.
    lane = jax.lax.broadcasted_iota(jnp.int32, (tile_n, 128), 1)
    out_ref[...] = jnp.where(lane == 0, contrib, 0.0)


def npair_loss(embeddings, n_pairs, l2_reg=0.02, tile_n=None):
    """Pallas-TPU forward for NPairLoss_labels given precomputed pair indices."""
    idx = np.asarray(n_pairs)
    anchors = embeddings[idx[:, 0]]        # (n, E) gather kept in the JAX wrapper
    positives = embeddings[idx[:, 1]]      # (n, E)

    n, e = anchors.shape
    dtype = anchors.dtype                  # keep input dtype (bf16 stays bf16 on the MXU)
    e_pad = _round_up(e, 128)
    if tile_n is None:
        tile_n = min(128, _round_up(n, 8))           # 128 keeps f32 temporaries small
    tile_n = _round_up(tile_n, 8)
    n_rows_pad = _round_up(n, tile_n)                # anchor rows padded to the tile
    n_cols_pad = _round_up(n, 128)                   # S columns padded only to 128
    num_tiles = n_rows_pad // tile_n
    itemsize = jnp.dtype(dtype).itemsize

    anchors_p = jnp.pad(anchors, ((0, n_rows_pad - n), (0, e_pad - e)))
    prows_p = jnp.pad(positives, ((0, n_rows_pad - n), (0, e_pad - e)))
    pall_p = jnp.pad(positives, ((0, n_cols_pad - n), (0, e_pad - e)))

    # VMEM budget derived from the actual footprint (resident P + pipelined tiles + f32 temps).
    try:
        phys_vmem = int(pltpu.get_tpu_info().vmem_capacity_bytes)
    except Exception:
        phys_vmem = 64 * 1024 * 1024                     # conservative (v7x per-core VMEM)
    needed = (2 * n_cols_pad * e_pad * itemsize          # resident positives (worst case 2x)
              + 4 * tile_n * e_pad * itemsize            # anchors + positive-row tiles (2x buf)
              + 2 * tile_n * 128 * 4                     # output tiles
              + 4 * tile_n * n_cols_pad * 4)             # s / x / exp / mask f32 temporaries
    vmem_limit = int(min(max(needed * 5 // 4 + (4 << 20), 32 << 20), phys_vmem * 85 // 100))
    # TODO(synk): for very large n*E where the resident P block exceeds the VMEM budget
    # (binds first on v7x's 64 MiB), add a streamed-P 2-D grid variant (row tiles x P column
    # tiles with a per-row expsum accumulator) instead of the resident block.

    cost = pl.CostEstimate(
        flops=int(2 * n_rows_pad * n_cols_pad * e_pad + 6 * n_rows_pad * e_pad),
        transcendentals=int(n_rows_pad * n_cols_pad + n_rows_pad),
        bytes_accessed=int((2 * n_rows_pad + n_cols_pad) * e_pad * itemsize
                           + n_rows_pad * 128 * 4))

    kernel = functools.partial(_npair_loss_kernel, n, float(l2_reg))

    def build(single_buffer_resident):
        resident_kwargs = (dict(pipeline_mode=pl.Buffered(1))
                           if single_buffer_resident else {})
        return pl.pallas_call(
            kernel,
            out_shape=jax.ShapeDtypeStruct((n_rows_pad, 128), jnp.float32),
            grid=(num_tiles,),
            in_specs=[
                pl.BlockSpec((tile_n, e_pad), lambda i: (i, 0)),       # anchors (pipelined)
                pl.BlockSpec((tile_n, e_pad), lambda i: (i, 0)),       # matching positive rows
                pl.BlockSpec((n_cols_pad, e_pad), lambda i: (0, 0),    # all positives, resident
                             **resident_kwargs),
            ],
            out_specs=pl.BlockSpec((tile_n, 128), lambda i: (i, 0)),   # per-row partials
            compiler_params=pltpu.CompilerParams(
                dimension_semantics=("parallel",),                     # independent row tiles
                vmem_limit_bytes=vmem_limit),
            cost_estimate=cost,
        )

    try:
        out = build(True)(anchors_p, prows_p, pall_p)
    except Exception:
        # Fallback for jax builds without single-buffer (Buffered(1)) support on resident blocks.
        out = build(False)(anchors_p, prows_p, pall_p)

    # mean_i log(1 + sum_j exp(.)) + l2_reg * sum_i(|a|^2+|p|^2)/n  ==  sum_i contrib_i / n
    return jnp.sum(out) * jnp.float32(1.0 / n)


def _reference(embeddings, n_pairs, n_negatives, l2_reg):
    # Pure-JAX reference mirroring the PyTorch module exactly.
    anchors = embeddings[n_pairs[:, 0]].astype(jnp.float32)
    positives = embeddings[n_pairs[:, 1]].astype(jnp.float32)
    negatives = embeddings[n_negatives].astype(jnp.float32)     # (n, n-1, E)
    x = jnp.einsum('ne,nke->nk', anchors, negatives - positives[:, None, :],
                   precision=jax.lax.Precision.HIGHEST)
    x = jnp.sum(jnp.exp(x), axis=1)
    n_pair = jnp.mean(jnp.log(1.0 + x))
    l2 = jnp.sum(anchors ** 2 + positives ** 2) / anchors.shape[0]
    return n_pair + l2_reg * l2


if __name__ == "__main__":
    rng = np.random.RandomState(0)
    key = jax.random.PRNGKey(0)

    cases = [
        # (batch, emb_dim, dtype, forced tile_n)
        (8, 32, jnp.float32, None),     # n = 4 pairs  -> single row tile
        (40, 48, jnp.float32, 8),       # n = 20 pairs -> 3 row tiles, tail rows masked
        (24, 64, jnp.bfloat16, None),   # n = 12 pairs -> native bf16 operands on the MXU
    ]
    ok = True
    for case_idx, (batch, emb_dim, dtype, tile_n) in enumerate(cases):
        key, k_emb = jax.random.split(key)
        labels = np.repeat(np.arange(batch // 2), 2)   # every class appears twice
        rng.shuffle(labels)
        emb = (0.3 * jax.random.normal(k_emb, (batch, emb_dim), dtype=jnp.float32)).astype(dtype)

        n_pairs, n_negatives = get_n_pairs(labels, rng)
        loss = npair_loss(emb, n_pairs, l2_reg=0.02, tile_n=tile_n)
        loss = jax.block_until_ready(loss)
        ref = _reference(emb, n_pairs, n_negatives, 0.02)

        if not jnp.allclose(loss, ref, atol=1e-3, rtol=1e-3):
            ok = False
            print(f"case {case_idx}: mismatch kernel={float(loss)} ref={float(ref)}")

    assert ok
    print("KERNEL_OK")
</pallas_src>

<mosaic_0001>
module attributes {stable_mosaic.version = 11 : i64} {
  func.func @_npair_loss_kernel(%arg0: i32, %arg1: memref<8x128xf32, #tpu.memory_space<vmem>>, %arg2: memref<8x128xf32, #tpu.memory_space<vmem>>, %arg3: memref<128x128xf32, #tpu.memory_space<vmem>>, %arg4: memref<8x128xf32, #tpu.memory_space<vmem>>) attributes {dimension_semantics = [#tpu.dimension_semantics<parallel>], iteration_bounds = array<i64: 1>, scalar_prefetch = 0 : i64, scratch_operands = 0 : i64, tpu.core_type = #tpu.core_type<tc>, window_params = [{transform_indices = @transform_0, window_bounds = array<i64: 8, 128>}, {transform_indices = @transform_1, window_bounds = array<i64: 8, 128>}, {pipeline_mode = #tpu.pipeline_mode<synchronous>, transform_indices = @transform_2, window_bounds = array<i64: 128, 128>}, {transform_indices = @transform_3, window_bounds = array<i64: 8, 128>}]} {
    %c0 = arith.constant 0 : index
    %c0_0 = arith.constant 0 : index
    %0 = vector.load %arg1[%c0, %c0_0] : memref<8x128xf32, #tpu.memory_space<vmem>>, vector<8x128xf32>
    %c0_1 = arith.constant 0 : index
    %c0_2 = arith.constant 0 : index
    %1 = vector.load %arg3[%c0_1, %c0_2] : memref<128x128xf32, #tpu.memory_space<vmem>>, vector<128x128xf32>
    %cst = arith.constant dense<0.000000e+00> : vector<8x128xf32>
    %2 = tpu.matmul %0, %1, %cst {dimension_numbers = #tpu.dot_dimension_numbers<[1], [1], [0], [0], [0, 0, 1, 0], [], []>} : vector<8x128xf32>, vector<128x128xf32>, vector<8x128xf32> -> vector<8x128xf32>
    %c0_3 = arith.constant 0 : index
    %c0_4 = arith.constant 0 : index
    %3 = vector.load %arg1[%c0_3, %c0_4] : memref<8x128xf32, #tpu.memory_space<vmem>>, vector<8x128xf32>
    %c0_5 = arith.constant 0 : index
    %c0_6 = arith.constant 0 : index
    %4 = vector.load %arg2[%c0_5, %c0_6] : memref<8x128xf32, #tpu.memory_space<vmem>>, vector<8x128xf32>
    %5 = arith.mulf %3, %4 : vector<8x128xf32>
    %cst_7 = arith.constant dense<0.000000e+00> : vector<8xf32>
    %6 = vector.multi_reduction <add>, %5, %cst_7 [1] : vector<8x128xf32> to vector<8xf32>
    %7 = vector.shape_cast %6 : vector<8xf32> to vector<8x1xf32>
    %8 = arith.mulf %3, %3 : vector<8x128xf32>
    %9 = arith.mulf %4, %4 : vector<8x128xf32>
    %10 = arith.addf %8, %9 : vector<8x128xf32>
    %cst_8 = arith.constant dense<0.000000e+00> : vector<8xf32>
    %11 = vector.multi_reduction <add>, %10, %cst_8 [1] : vector<8x128xf32> to vector<8xf32>
    %12 = vector.shape_cast %11 : vector<8xf32> to vector<8x1xf32>
    %13 = tpu.iota {dimensions = array<i32: 1>} : vector<8x128xi32>
    %c4_i32 = arith.constant 4 : i32
    %14 = vector.broadcast %c4_i32 : i32 to vector<8x128xi32>
    %15 = arith.cmpi slt, %13, %14 : vector<8x128xi32>
    %16 = vector.broadcast %7 : vector<8x1xf32> to vector<8x128xf32>
    %17 = arith.subf %2, %16 : vector<8x128xf32>
    %cst_9 = arith.constant 0xFF800000 : f32
    %18 = vector.broadcast %cst_9 : f32 to vector<8x128xf32>
    %19 = arith.select %15, %17, %18 : vector<8x128xi1>, vector<8x128xf32>
    %20 = math.exp %19 : vector<8x128xf32>
    %cst_10 = arith.constant dense<0.000000e+00> : vector<8xf32>
    %21 = vector.multi_reduction <add>, %20, %cst_10 [1] : vector<8x128xf32> to vector<8xf32>
    %22 = vector.shape_cast %21 : vector<8xf32> to vector<8x1xf32>
    %23 = tpu.iota {dimensions = array<i32: 0>} : vector<8x1xi32>
    %c8_i32 = arith.constant 8 : i32
    %24 = arith.muli %arg0, %c8_i32 : i32
    %25 = vector.broadcast %24 : i32 to vector<8x1xi32>
    %26 = arith.addi %23, %25 : vector<8x1xi32>
    %27 = math.log %22 : vector<8x1xf32>
    %cst_11 = arith.constant 2.000000e-02 : f32
    %28 = vector.broadcast %cst_11 : f32 to vector<8x1xf32>
    %29 = arith.mulf %28, %12 : vector<8x1xf32>
    %30 = arith.addf %27, %29 : vector<8x1xf32>
    %c4_i32_12 = arith.constant 4 : i32
    %31 = vector.broadcast %c4_i32_12 : i32 to vector<8x1xi32>
    %32 = arith.cmpi slt, %26, %31 : vector<8x1xi32>
    %cst_13 = arith.constant 0.000000e+00 : f32
    %33 = vector.broadcast %cst_13 : f32 to vector<8x1xf32>
    %34 = arith.select %32, %30, %33 : vector<8x1xi1>, vector<8x1xf32>
    %35 = tpu.iota {dimensions = array<i32: 1>} : vector<8x128xi32>
    %c0_i32 = arith.constant 0 : i32
    %36 = vector.broadcast %c0_i32 : i32 to vector<8x128xi32>
    %37 = arith.cmpi eq, %35, %36 : vector<8x128xi32>
    %cst_14 = arith.constant 0.000000e+00 : f32
    %38 = vector.shape_cast %34 : vector<8x1xf32> to vector<8x1xf32>
    %39 = vector.broadcast %38 : vector<8x1xf32> to vector<8x128xf32>
    %40 = vector.broadcast %cst_14 : f32 to vector<8x128xf32>
    %41 = arith.select %37, %39, %40 : vector<8x128xi1>, vector<8x128xf32>
    %c0_15 = arith.constant 0 : index
    %c0_16 = arith.constant 0 : index
    %42 = vector.load %arg4[%c0_15, %c0_16] : memref<8x128xf32, #tpu.memory_space<vmem>>, vector<8x128xf32>
    tpu.vector_store %arg4[%c0_15, %c0_16], %41 {strides = array<i32>} : memref<8x128xf32, #tpu.memory_space<vmem>>, vector<8x128xf32>,
    return
  }
  func.func @transform_0(%arg0: i32) -> (i32, i32) {
    %c0_i32 = arith.constant 0 : i32
    %c0_i32_0 = arith.constant 0 : i32
    return %arg0, %c0_i32 : i32, i32
  }
  func.func @transform_1(%arg0: i32) -> (i32, i32) {
    %c0_i32 = arith.constant 0 : i32
    %c0_i32_0 = arith.constant 0 : i32
    return %arg0, %c0_i32 : i32, i32
  }
  func.func @transform_2(%arg0: i32) -> (i32, i32) {
    %c0_i32 = arith.constant 0 : i32
    %c0_i32_0 = arith.constant 0 : i32
    %c0_i32_1 = arith.constant 0 : i32
    return %c0_i32, %c0_i32_0 : i32, i32
  }
  func.func @transform_3(%arg0: i32) -> (i32, i32) {
    %c0_i32 = arith.constant 0 : i32
    %c0_i32_0 = arith.constant 0 : i32
    return %arg0, %c0_i32 : i32, i32
  }
}

module attributes {stable_mosaic.version = 11 : i64} {
  func.func @_npair_loss_kernel(%arg0: i32, %arg1: memref<8x128xf32, #tpu.memory_space<vmem>>, %arg2: memref<8x128xf32, #tpu.memory_space<vmem>>, %arg3: memref<128x128xf32, #tpu.memory_space<vmem>>, %arg4: memref<8x128xf32, #tpu.memory_space<vmem>>) attributes {dimension_semantics = [#tpu.dimension_semantics<parallel>], iteration_bounds = array<i64: 1>, scalar_prefetch = 0 : i64, scratch_operands = 0 : i64, tpu.core_type = #tpu.core_type<tc>, window_params = [{transform_indices = @transform_0, window_bounds = array<i64: 8, 128>}, {transform_indices = @transform_1, window_bounds = array<i64: 8, 128>}, {pipeline_mode = #tpu.pipeline_mode<synchronous>, transform_indices = @transform_2, window_bounds = array<i64: 128, 128>}, {transform_indices = @transform_3, window_bounds = array<i64: 8, 128>}]} {
    %c0 = arith.constant 0 : index
    %c0_0 = arith.constant 0 : index
    %0 = vector.load %arg1[%c0, %c0_0] : memref<8x128xf32, #tpu.memory_space<vmem>>, vector<8x128xf32>
    %c0_1 = arith.constant 0 : index
    %c0_2 = arith.constant 0 : index
    %1 = vector.load %arg3[%c0_1, %c0_2] : memref<128x128xf32, #tpu.memory_space<vmem>>, vector<128x128xf32>
    %cst = arith.constant dense<0.000000e+00> : vector<8x128xf32>
    %2 = tpu.matmul %0, %1, %cst {dimension_numbers = #tpu.dot_dimension_numbers<[1], [1], [0], [0], [0, 0, 1, 0], [], []>} : vector<8x128xf32>, vector<128x128xf32>, vector<8x128xf32> -> vector<8x128xf32>
    %c0_3 = arith.constant 0 : index
    %c0_4 = arith.constant 0 : index
    %3 = vector.load %arg1[%c0_3, %c0_4] : memref<8x128xf32, #tpu.memory_space<vmem>>, vector<8x128xf32>
    %c0_5 = arith.constant 0 : index
    %c0_6 = arith.constant 0 : index
    %4 = vector.load %arg2[%c0_5, %c0_6] : memref<8x128xf32, #tpu.memory_space<vmem>>, vector<8x128xf32>
    %5 = arith.mulf %3, %4 : vector<8x128xf32>
    %cst_7 = arith.constant dense<0.000000e+00> : vector<8xf32>
    %6 = vector.multi_reduction <add>, %5, %cst_7 [1] : vector<8x128xf32> to vector<8xf32>
    %7 = vector.shape_cast %6 : vector<8xf32> to vector<8x1xf32>
    %8 = arith.mulf %3, %3 : vector<8x128xf32>
    %9 = arith.mulf %4, %4 : vector<8x128xf32>
    %10 = arith.addf %8, %9 : vector<8x128xf32>
    %cst_8 = arith.constant dense<0.000000e+00> : vector<8xf32>
    %11 = vector.multi_reduction <add>, %10, %cst_8 [1] : vector<8x128xf32> to vector<8xf32>
    %12 = vector.shape_cast %11 : vector<8xf32> to vector<8x1xf32>
    %13 = tpu.iota {dimensions = array<i32: 1>} : vector<8x128xi32>
    %c4_i32 = arith.constant 4 : i32
    %14 = vector.broadcast %c4_i32 : i32 to vector<8x128xi32>
    %15 = arith.cmpi slt, %13, %14 : vector<8x128xi32>
    %16 = vector.broadcast %7 : vector<8x1xf32> to vector<8x128xf32>
    %17 = arith.subf %2, %16 : vector<8x128xf32>
    %cst_9 = arith.constant 0xFF800000 : f32
    %18 = vector.broadcast %cst_9 : f32 to vector<8x128xf32>
    %19 = arith.select %15, %17, %18 : vector<8x128xi1>, vector<8x128xf32>
    %20 = math.exp %19 : vector<8x128xf32>
    %cst_10 = arith.constant dense<0.000000e+00> : vector<8xf32>
    %21 = vector.multi_reduction <add>, %20, %cst_10 [1] : vector<8x128xf32> to vector<8xf32>
    %22 = vector.shape_cast %21 : vector<8xf32> to vector<8x1xf32>
    %23 = tpu.iota {dimensions = array<i32: 0>} : vector<8x1xi32>
    %c8_i32 = arith.constant 8 : i32
    %24 = arith.muli %arg0, %c8_i32 : i32
    %25 = vector.broadcast %24 : i32 to vector<8x1xi32>
    %26 = arith.addi %23, %25 : vector<8x1xi32>
    %27 = math.log %22 : vector<8x1xf32>
    %cst_11 = arith.constant 2.000000e-02 : f32
    %28 = vector.broadcast %cst_11 : f32 to vector<8x1xf32>
    %29 = arith.mulf %28, %12 : vector<8x1xf32>
    %30 = arith.addf %27, %29 : vector<8x1xf32>
    %c4_i32_12 = arith.constant 4 : i32
    %31 = vector.broadcast %c4_i32_12 : i32 to vector<8x1xi32>
    %32 = arith.cmpi slt, %26, %31 : vector<8x1xi32>
    %cst_13 = arith.constant 0.000000e+00 : f32
    %33 = vector.broadcast %cst_13 : f32 to vector<8x1xf32>
    %34 = arith.select %32, %30, %33 : vector<8x1xi1>, vector<8x1xf32>
    %35 = tpu.iota {dimensions = array<i32: 1>} : vector<8x128xi32>
    %c0_i32 = arith.constant 0 : i32
    %36 = vector.broadcast %c0_i32 : i32 to vector<8x128xi32>
    %37 = arith.cmpi eq, %35, %36 : vector<8x128xi32>
    %cst_14 = arith.constant 0.000000e+00 : f32
    %38 = vector.shape_cast %34 : vector<8x1xf32> to vector<8x1xf32>
    %39 = vector.broadcast %38 : vector<8x1xf32> to vector<8x128xf32>
    %40 = vector.broadcast %cst_14 : f32 to vector<8x128xf32>
    %41 = arith.select %37, %39, %40 : vector<8x128xi1>, vector<8x128xf32>
    %c0_15 = arith.constant 0 : index
    %c0_16 = arith.constant 0 : index
    %42 = vector.load %arg4[%c0_15, %c0_16] : memref<8x128xf32, #tpu.memory_space<vmem>>, vector<8x128xf32>
    tpu.vector_store %arg4[%c0_15, %c0_16], %41 {strides = array<i32>} : memref<8x128xf32, #tpu.memory_space<vmem>>, vector<8x128xf32>,
    return
  }
  func.func @transform_0(%arg0: i32) -> (i32, i32) {
    %c0_i32 = arith.constant 0 : i32
    %c0_i32_0 = arith.constant 0 : i32
    return %arg0, %c0_i32 : i32, i32
  }
  func.func @transform_1(%arg0: i32) -> (i32, i32) {
    %c0_i32 = arith.constant 0 : i32
    %c0_i32_0 = arith.constant 0 : i32
    return %arg0, %c0_i32 : i32, i32
  }
  func.func @transform_2(%arg0: i32) -> (i32, i32) {
    %c0_i32 = arith.constant 0 : i32
    %c0_i32_0 = arith.constant 0 : i32
    %c0_i32_1 = arith.constant 0 : i32
    return %c0_i32, %c0_i32_0 : i32, i32
  }
  func.func @transform_3(%arg0: i32) -> (i32, i32) {
    %c0_i32 = arith.constant 0 : i32
    %c0_i32_0 = arith.constant 0 : i32
    return %arg0, %c0_i32 : i32, i32
  }
}

</mosaic_0001>

<llo_original>
// kernel: tpu_custom_call.1
$region0: #{tpu_custom_call.1}
  #allocation0 [shape = 'u32[]', space=smem, size = 0x4, offset = 0x4, fixed_abs, tag = 'smem constant byte address 0x4 - core index']
  #allocation1 [shape = 'u32[72,128]{1,0:T(1,128)}', space=vmem, size = 0x9000, scoped, tag = 'internal scratch']
  %s0 = inlined_call_operand.hbm [shape: f32[8,128], index: 0, kind: input, shape index: {}]
  %s1 = inlined_call_operand.hbm [shape: f32[8,128], index: 1, kind: input, shape index: {}]
  %s2 = inlined_call_operand.hbm [shape: f32[128,128], index: 2, kind: input, shape index: {}]
  %s3 = inlined_call_operand.hbm [shape: f32[8,128], index: 3, kind: output, shape index: {}]
  %s4 = sld [smem:[#allocation0]]
  $region34: #{tpu_custom_call.1} parent=0
    _
  %s6 = ssub.s32 1, %s4
  %s7 = scalar_select 0, %s6, %s4
  $region1: #{tpu_custom_call.1} parent=0
    #allocation2 [shape = 'u8[4096]{0}', space=vmem, size = 0x1000, scoped, tag = 'input window, operand 0, single buffered']
    #allocation3 [shape = 's32[1]{0}', space=sflag, size = 0x4, scoped, tag = 'scoped memory for tpu_custom_call.1']
    #allocation4 [shape = 's32[1]{0}', space=sflag, size = 0x4, scoped, tag = 'scoped memory for tpu_custom_call.1']
    #allocation5 [shape = 'u8[4096]{0}', space=vmem, size = 0x1000, scoped, tag = 'input window, operand 1, single buffered']
    #allocation6 [shape = 's32[1]{0}', space=sflag, size = 0x4, scoped, tag = 'scoped memory for tpu_custom_call.1']
    #allocation7 [shape = 'u8[65536]{0}', space=vmem, size = 0x10000, scoped, tag = 'input window, operand 2, single buffered']
    #allocation8 [shape = 'u8[4096]{0}', space=vmem, size = 0x1000, scoped, tag = 'output window, operand 0, single buffered']
    %8 = vsyncpa [#allocation3], 0
    %9 = vsyncpa [#allocation6], 0
    %10 = vsyncpa [#allocation4], 0
    // Predicated region
    $region2: #{tpu_custom_call.1} parent=1 // pred_check
      _
    $region3: #{tpu_custom_call.1} parent=1 // pred_check_branch
      %12 = sbr.rel (0) target = $region5
    $region4: #{tpu_custom_call.1} parent=1 // pred_region
      %14 = vsyncadd [#allocation3], 0
      %s16 = sshll.u32 %s0, 4
      %s17 = int_to_ptr.hbm [resolvable:$true] %s16
      %s18 = sshll.u32 [#allocation2], 4
      %s19 = int_to_ptr.vmem [resolvable:$true] %s18
      %21 = dma.hbm_to_vmem [thread:$0]  %s17, 128, %s19, [#allocation3]
    $region5: #{tpu_custom_call.1} parent=1 // pred_fallthru
      _
    // Predicated region
    $region6: #{tpu_custom_call.1} parent=1 // pred_check
      _
    $region7: #{tpu_custom_call.1} parent=1 // pred_check_branch
      %23 = sbr.rel (0) target = $region9
    $region8: #{tpu_custom_call.1} parent=1 // pred_region
      %25 = vsyncadd [#allocation6], 0
      %s27 = sshll.u32 %s1, 4
      %s28 = int_to_ptr.hbm [resolvable:$true] %s27
      %s29 = sshll.u32 [#allocation5], 4
      %s30 = int_to_ptr.vmem [resolvable:$true] %s29
      %32 = dma.hbm_to_vmem [thread:$0]  %s28, 128, %s30, [#allocation6]
    $region9: #{tpu_custom_call.1} parent=1 // pred_fallthru
      _
    // Predicated region
    $region10: #{tpu_custom_call.1} parent=1 // pred_check
      _
    $region11: #{tpu_custom_call.1} parent=1 // pred_check_branch
      %34 = sbr.rel (0) target = $region13
    $region12: #{tpu_custom_call.1} parent=1 // pred_region
      %36 = vsyncadd [#allocation6], 0
      %s37 = sshll.u32 %s2, 4
      %s38 = int_to_ptr.hbm [resolvable:$true] %s37
      %s39 = sshll.u32 [#allocation7], 4
      %s40 = int_to_ptr.vmem [resolvable:$true] %s39
      %45 = dma.hbm_to_vmem [thread:$0]  %s38, 2048, %s40, [#allocation6], 128, 128, 8
    $region13: #{tpu_custom_call.1} parent=1 // pred_fallthru
      _
    // Predicated region
    $region14: #{tpu_custom_call.1} parent=1 // pred_check
      _
    $region15: #{tpu_custom_call.1} parent=1 // pred_check_branch
      %47 = sbr.rel (0) target = $region17
    $region16: #{tpu_custom_call.1} parent=1 // pred_region
      %49 = dma.done [#allocation3], 128
    $region17: #{tpu_custom_call.1} parent=1 // pred_fallthru
      _
    // Predicated region
    $region18: #{tpu_custom_call.1} parent=1 // pred_check
      _
    $region19: #{tpu_custom_call.1} parent=1 // pred_check_branch
      %51 = sbr.rel (0) target = $region21
    $region20: #{tpu_custom_call.1} parent=1 // pred_region
      %53 = dma.done [#allocation6], 128
    $region21: #{tpu_custom_call.1} parent=1 // pred_fallthru
      _
    // Predicated region
    $region22: #{tpu_custom_call.1} parent=1 // pred_check
      _
    $region23: #{tpu_custom_call.1} parent=1 // pred_check_branch
      %55 = sbr.rel (0) target = $region25
    $region24: #{tpu_custom_call.1} parent=1 // pred_region
      %57 = dma.done [#allocation6], 2048
    $region25: #{tpu_custom_call.1} parent=1 // pred_fallthru
      _
    %v58 = vld [vmem:[#allocation2] sm:$0xff]
    %v59 = vld [vmem:[#allocation7] sm:$0xff]
    %v60 = vld [vmem:[#allocation7 + $0x8] sm:$0xff]
    %v61 = vld [vmem:[#allocation7 + $0x10] sm:$0xff]
    %v62 = vld [vmem:[#allocation7 + $0x18] sm:$0xff]
    %v63 = vld [vmem:[#allocation7 + $0x20] sm:$0xff]
    %v64 = vld [vmem:[#allocation7 + $0x28] sm:$0xff]
    %v65 = vld [vmem:[#allocation7 + $0x30] sm:$0xff]
    %v66 = vld [vmem:[#allocation7 + $0x38] sm:$0xff]
    %v67 = vld [vmem:[#allocation7 + $0x40] sm:$0xff]
    %v68 = vld [vmem:[#allocation7 + $0x48] sm:$0xff]
    %v69 = vld [vmem:[#allocation7 + $0x50] sm:$0xff]
    %v70 = vld [vmem:[#allocation7 + $0x58] sm:$0xff]
    %v71 = vld [vmem:[#allocation7 + $0x60] sm:$0xff]
    %v72 = vld [vmem:[#allocation7 + $0x68] sm:$0xff]
    %v73 = vld [vmem:[#allocation7 + $0x70] sm:$0xff]
    %v74 = vld [vmem:[#allocation7 + $0x78] sm:$0xff]
    %75 = vmatpush.xpose.msra.mxu0 %v74
    %76 = vmatpush.xpose.msra.mxu0 %v73
    %77 = vmatpush.xpose.msra.mxu0 %v72
    %78 = vmatpush.xpose.msra.mxu0 %v71
    %79 = vmatpush.xpose.msra.mxu0 %v70
    %80 = vmatpush.xpose.msra.mxu0 %v69
    %81 = vmatpush.xpose.msra.mxu0 %v68
    %82 = vmatpush.xpose.msra.mxu0 %v67
    %83 = vmatpush.xpose.msra.mxu0 %v66
    %84 = vmatpush.xpose.msra.mxu0 %v65
    %85 = vmatpush.xpose.msra.mxu0 %v64
    %86 = vmatpush.xpose.msra.mxu0 %v63
    %87 = vmatpush.xpose.msra.mxu0 %v62
    %88 = vmatpush.xpose.msra.mxu0 %v61
    %89 = vmatpush.xpose.msra.mxu0 %v60
    %90 = vmatpush.xpose.msra.mxu0 %v59
    %91 = vmatmul.f32.gmra.mxu0 %v58
    %v92 = vpop.f32.mrf.mxu0
    %v93 = vadd.f32 0.0, %v92
    %94 = vdwg.mxu0
    %v95 = vld [vmem:[#allocation5] sm:$0xff]
    %v96 = vmul.f32 %v58, %v95
    %97 = vadd.xlane.f32.xlu0 %v96
    %v98 = vpop.xlane.xlu0 %97
    %v99 = vmul.f32 %v58, %v58
    %v100 = vmul.f32 %v95, %v95
    %v101 = vadd.f32 %v99, %v100
    %102 = vadd.xlane.f32.xlu0 %v101
    %v103 = vpop.xlane.xlu0 %102
    %v104 = vlaneseq
    %v105 = vand.u32 %v104, 127
    %vm106 = vcmp.lt.s32.totalorder %v105, 4
    %v107 = vsub.f32 %v93, %v98
    %v108 = vsel %vm106, %v107, -inf
    %v109 = vmul.f32 %v108, 1.442695
    %v110 = vpow.pop %v109
    %111 = vadd.xlane.f32.xlu0 %v110
    %v112 = vpop.xlane.xlu0 %111
    %v113 = vlaneseq
    %v114 = vshrl.u32 %v113, 7
    %s115 = smul.u32 0, 8
    %v116 = vstv %s115
    %v117 = vadd.s32 %v114, %v116
    %v118 = vlog2.pop %v112
    %v119 = vmul.f32 %v118, 0.6931472
    %v120 = vmul.f32 %v103, 0.02
    %v121 = vadd.f32 %v119, %v120
    %vm122 = vcmp.lt.s32.totalorder %v117, 4
    %v123 = vsel %vm122, %v121, 0.0
    %vm124 = vcmp.eq.s32.totalorder %v105, 0
    %v125 = vsel %vm124, %v123, 0.0
    %126 = vst [vmem:[#allocation8] sm:$0xff] %v125
    // Predicated region
    $region26: #{tpu_custom_call.1} parent=1 // pred_check
      _
    $region27: #{tpu_custom_call.1} parent=1 // pred_check_branch
      %128 = sbr.rel (0) target = $region29
    $region28: #{tpu_custom_call.1} parent=1 // pred_region
      %130 = vsyncadd [#allocation4], 0
      %s132 = sshll.u32 [#allocation8], 4
      %s133 = int_to_ptr.vmem [resolvable:$true] %s132
      %s134 = sshll.u32 %s3, 4
      %s135 = int_to_ptr.hbm [resolvable:$true] %s134
      %137 = dma.vmem_to_hbm [thread:$0]  %s133, 128, %s135, [#allocation4]
    $region29: #{tpu_custom_call.1} parent=1 // pred_fallthru
      _
    // Predicated region
    $region30: #{tpu_custom_call.1} parent=1 // pred_check
      _
    $region31: #{tpu_custom_call.1} parent=1 // pred_check_branch
      %139 = sbr.rel (0) target = $region33
    $region32: #{tpu_custom_call.1} parent=1 // pred_region
      %141 = dma.done [#allocation4], 128
    $region33: #{tpu_custom_call.1} parent=1 // pred_fallthru
      _
    %142 = vsyncpa [#allocation3], 1
    %143 = vsyncpa [#allocation6], 1
    %144 = vsyncpa [#allocation4], 1

// kernel: tpu_custom_call.1
$region0: #{tpu_custom_call.1}
  #allocation0 [shape = 'u32[]', space=smem, size = 0x4, offset = 0x4, fixed_abs, tag = 'smem constant byte address 0x4 - core index']
  #allocation1 [shape = 'u32[72,128]{1,0:T(1,128)}', space=vmem, size = 0x9000, scoped, tag = 'internal scratch']
  %s0 = inlined_call_operand.hbm [shape: f32[8,128], index: 0, kind: input, shape index: {}]
  %s1 = inlined_call_operand.hbm [shape: f32[8,128], index: 1, kind: input, shape index: {}]
  %s2 = inlined_call_operand.hbm [shape: f32[128,128], index: 2, kind: input, shape index: {}]
  %s3 = inlined_call_operand.hbm [shape: f32[8,128], index: 3, kind: output, shape index: {}]
  %s4 = sld [smem:[#allocation0]]
  $region34: #{tpu_custom_call.1} parent=0
    _
  %s6 = ssub.s32 1, %s4
  %s7 = scalar_select 0, %s6, %s4
  $region1: #{tpu_custom_call.1} parent=0
    #allocation2 [shape = 'u8[4096]{0}', space=vmem, size = 0x1000, scoped, tag = 'input window, operand 0, single buffered']
    #allocation3 [shape = 's32[1]{0}', space=sflag, size = 0x4, scoped, tag = 'scoped memory for tpu_custom_call.1']
    #allocation4 [shape = 's32[1]{0}', space=sflag, size = 0x4, scoped, tag = 'scoped memory for tpu_custom_call.1']
    #allocation5 [shape = 'u8[4096]{0}', space=vmem, size = 0x1000, scoped, tag = 'input window, operand 1, single buffered']
    #allocation6 [shape = 's32[1]{0}', space=sflag, size = 0x4, scoped, tag = 'scoped memory for tpu_custom_call.1']
    #allocation7 [shape = 'u8[65536]{0}', space=vmem, size = 0x10000, scoped, tag = 'input window, operand 2, single buffered']
    #allocation8 [shape = 'u8[4096]{0}', space=vmem, size = 0x1000, scoped, tag = 'output window, operand 0, single buffered']
    %8 = vsyncpa [#allocation3], 0
    %9 = vsyncpa [#allocation6], 0
    %10 = vsyncpa [#allocation4], 0
    // Predicated region
    $region2: #{tpu_custom_call.1} parent=1 // pred_check
      _
    $region3: #{tpu_custom_call.1} parent=1 // pred_check_branch
      %12 = sbr.rel (0) target = $region5
    $region4: #{tpu_custom_call.1} parent=1 // pred_region
      %14 = vsyncadd [#allocation3], 0
      %s16 = sshll.u32 %s0, 4
      %s17 = int_to_ptr.hbm [resolvable:$true] %s16
      %s18 = sshll.u32 [#allocation2], 4
      %s19 = int_to_ptr.vmem [resolvable:$true] %s18
      %21 = dma.hbm_to_vmem [thread:$0]  %s17, 128, %s19, [#allocation3]
    $region5: #{tpu_custom_call.1} parent=1 // pred_fallthru
      _
    // Predicated region
    $region6: #{tpu_custom_call.1} parent=1 // pred_check
      _
    $region7: #{tpu_custom_call.1} parent=1 // pred_check_branch
      %23 = sbr.rel (0) target = $region9
    $region8: #{tpu_custom_call.1} parent=1 // pred_region
      %25 = vsyncadd [#allocation6], 0
      %s27 = sshll.u32 %s1, 4
      %s28 = int_to_ptr.hbm [resolvable:$true] %s27
      %s29 = sshll.u32 [#allocation5], 4
      %s30 = int_to_ptr.vmem [resolvable:$true] %s29
      %32 = dma.hbm_to_vmem [thread:$0]  %s28, 128, %s30, [#allocation6]
    $region9: #{tpu_custom_call.1} parent=1 // pred_fallthru
      _
    // Predicated region
    $region10: #{tpu_custom_call.1} parent=1 // pred_check
      _
    $region11: #{tpu_custom_call.1} parent=1 // pred_check_branch
      %34 = sbr.rel (0) target = $region13
    $region12: #{tpu_custom_call.1} parent=1 // pred_region
      %36 = vsyncadd [#allocation6], 0
      %s37 = sshll.u32 %s2, 4
      %s38 = int_to_ptr.hbm [resolvable:$true] %s37
      %s39 = sshll.u32 [#allocation7], 4
      %s40 = int_to_ptr.vmem [resolvable:$true] %s39
      %45 = dma.hbm_to_vmem [thread:$0]  %s38, 2048, %s40, [#allocation6], 128, 128, 8
    $region13: #{tpu_custom_call.1} parent=1 // pred_fallthru
      _
    // Predicated region
    $region14: #{tpu_custom_call.1} parent=1 // pred_check
      _
    $region15: #{tpu_custom_call.1} parent=1 // pred_check_branch
      %47 = sbr.rel (0) target = $region17
    $region16: #{tpu_custom_call.1} parent=1 // pred_region
      %49 = dma.done [#allocation3], 128
    $region17: #{tpu_custom_call.1} parent=1 // pred_fallthru
      _
    // Predicated region
    $region18: #{tpu_custom_call.1} parent=1 // pred_check
      _
    $region19: #{tpu_custom_call.1} parent=1 // pred_check_branch
      %51 = sbr.rel (0) target = $region21
    $region20: #{tpu_custom_call.1} parent=1 // pred_region
      %53 = dma.done [#allocation6], 128
    $region21: #{tpu_custom_call.1} parent=1 // pred_fallthru
      _
    // Predicated region
    $region22: #{tpu_custom_call.1} parent=1 // pred_check
      _
    $region23: #{tpu_custom_call.1} parent=1 // pred_check_branch
      %55 = sbr.rel (0) target = $region25
    $region24: #{tpu_custom_call.1} parent=1 // pred_region
      %57 = dma.done [#allocation6], 2048
    $region25: #{tpu_custom_call.1} parent=1 // pred_fallthru
      _
    %v58 = vld [vmem:[#allocation2] sm:$0xff]
    %v59 = vld [vmem:[#allocation7] sm:$0xff]
    %v60 = vld [vmem:[#allocation7 + $0x8] sm:$0xff]
    %v61 = vld [vmem:[#allocation7 + $0x10] sm:$0xff]
    %v62 = vld [vmem:[#allocation7 + $0x18] sm:$0xff]
    %v63 = vld [vmem:[#allocation7 + $0x20] sm:$0xff]
    %v64 = vld [vmem:[#allocation7 + $0x28] sm:$0xff]
    %v65 = vld [vmem:[#allocation7 + $0x30] sm:$0xff]
    %v66 = vld [vmem:[#allocation7 + $0x38] sm:$0xff]
    %v67 = vld [vmem:[#allocation7 + $0x40] sm:$0xff]
    %v68 = vld [vmem:[#allocation7 + $0x48] sm:$0xff]
    %v69 = vld [vmem:[#allocation7 + $0x50] sm:$0xff]
    %v70 = vld [vmem:[#allocation7 + $0x58] sm:$0xff]
    %v71 = vld [vmem:[#allocation7 + $0x60] sm:$0xff]
    %v72 = vld [vmem:[#allocation7 + $0x68] sm:$0xff]
    %v73 = vld [vmem:[#allocation7 + $0x70] sm:$0xff]
    %v74 = vld [vmem:[#allocation7 + $0x78] sm:$0xff]
    %75 = vmatpush.xpose.msra.mxu0 %v74
    %76 = vmatpush.xpose.msra.mxu0 %v73
    %77 = vmatpush.xpose.msra.mxu0 %v72
    %78 = vmatpush.xpose.msra.mxu0 %v71
    %79 = vmatpush.xpose.msra.mxu0 %v70
    %80 = vmatpush.xpose.msra.mxu0 %v69
    %81 = vmatpush.xpose.msra.mxu0 %v68
    %82 = vmatpush.xpose.msra.mxu0 %v67
    %83 = vmatpush.xpose.msra.mxu0 %v66
    %84 = vmatpush.xpose.msra.mxu0 %v65
    %85 = vmatpush.xpose.msra.mxu0 %v64
    %86 = vmatpush.xpose.msra.mxu0 %v63
    %87 = vmatpush.xpose.msra.mxu0 %v62
    %88 = vmatpush.xpose.msra.mxu0 %v61
    %89 = vmatpush.xpose.msra.mxu0 %v60
    %90 = vmatpush.xpose.msra.mxu0 %v59
    %91 = vmatmul.f32.gmra.mxu0 %v58
    %v92 = vpop.f32.mrf.mxu0
    %v93 = vadd.f32 0.0, %v92
    %94 = vdwg.mxu0
    %v95 = vld [vmem:[#allocation5] sm:$0xff]
    %v96 = vmul.f32 %v58, %v95
    %97 = vadd.xlane.f32.xlu0 %v96
    %v98 = vpop.xlane.xlu0 %97
    %v99 = vmul.f32 %v58, %v58
    %v100 = vmul.f32 %v95, %v95
    %v101 = vadd.f32 %v99, %v100
    %102 = vadd.xlane.f32.xlu0 %v101
    %v103 = vpop.xlane.xlu0 %102
    %v104 = vlaneseq
    %v105 = vand.u32 %v104, 127
    %vm106 = vcmp.lt.s32.totalorder %v105, 4
    %v107 = vsub.f32 %v93, %v98
    %v108 = vsel %vm106, %v107, -inf
    %v109 = vmul.f32 %v108, 1.442695
    %v110 = vpow.pop %v109
    %111 = vadd.xlane.f32.xlu0 %v110
    %v112 = vpop.xlane.xlu0 %111
    %v113 = vlaneseq
    %v114 = vshrl.u32 %v113, 7
    %s115 = smul.u32 0, 8
    %v116 = vstv %s115
    %v117 = vadd.s32 %v114, %v116
    %v118 = vlog2.pop %v112
    %v119 = vmul.f32 %v118, 0.6931472
    %v120 = vmul.f32 %v103, 0.02
    %v121 = vadd.f32 %v119, %v120
    %vm122 = vcmp.lt.s32.totalorder %v117, 4
    %v123 = vsel %vm122, %v121, 0.0
    %vm124 = vcmp.eq.s32.totalorder %v105, 0
    %v125 = vsel %vm124, %v123, 0.0
    %126 = vst [vmem:[#allocation8] sm:$0xff] %v125
    // Predicated region
    $region26: #{tpu_custom_call.1} parent=1 // pred_check
      _
    $region27: #{tpu_custom_call.1} parent=1 // pred_check_branch
      %128 = sbr.rel (0) target = $region29
    $region28: #{tpu_custom_call.1} parent=1 // pred_region
      %130 = vsyncadd [#allocation4], 0
      %s132 = sshll.u32 [#allocation8], 4
      %s133 = int_to_ptr.vmem [resolvable:$true] %s132
      %s134 = sshll.u32 %s3, 4
      %s135 = int_to_ptr.hbm [resolvable:$true] %s134
      %137 = dma.vmem_to_hbm [thread:$0]  %s133, 128, %s135, [#allocation4]
    $region29: #{tpu_custom_call.1} parent=1 // pred_fallthru
      _
    // Predicated region
    $region30: #{tpu_custom_call.1} parent=1 // pred_check
      _
    $region31: #{tpu_custom_call.1} parent=1 // pred_check_branch
      %139 = sbr.rel (0) target = $region33
    $region32: #{tpu_custom_call.1} parent=1 // pred_region
      %141 = dma.done [#allocation4], 128
    $region33: #{tpu_custom_call.1} parent=1 // pred_fallthru
      _
    %142 = vsyncpa [#allocation3], 1
    %143 = vsyncpa [#allocation6], 1
    %144 = vsyncpa [#allocation4], 1

</llo_original>
